<compile_context>
chip_gen: v5e
topology: v5e:2x2
jax: 0.10.0
libtpu: 0.0.40
codegen_flags: <defaults>
</compile_context>

<pallas_src>
import functools

import numpy as np
import jax
import jax.numpy as jnp
from jax.experimental import pallas as pl
from jax.experimental.pallas import tpu as pltpu


# Parity decomposition of ConvTranspose2d(k=4, s=2, p=1):
#   output row oy = 2*m + py receives x[m + dy] * w[..., ky, :] for
#   (dy, ky) in _DY_TAPS[py]; columns are analogous with (_DX_TAPS[px]: dx -> kx).
_DY_TAPS = (((-1, 3), (0, 1)), ((0, 2), (1, 0)))
_DX_TAPS = ({-1: 3, 0: 1}, {0: 2, 1: 0})


# ----------------------------------------------------------------------------
# deconv1 (4x4, stride 1, pad 0, on a 1x1 input) == a single matmul.
# ----------------------------------------------------------------------------
def _deconv1_kernel(z_ref, w_ref, s_ref, b_ref, o_ref):
    # z_ref: (N, Cin) bf16 latent; w_ref: (Cin, 16*Cout) bf16, columns (oy, ox, c)
    # s_ref/b_ref: (1, 16*Cout) f32 folded BN scale / bias (conv bias folded in)
    # o_ref: (N, 16*Cout) bf16
    acc = jnp.dot(z_ref[...], w_ref[...], preferred_element_type=jnp.float32)
    acc = acc * s_ref[...] + b_ref[...]
    o_ref[...] = jnp.maximum(acc, 0.0).astype(o_ref.dtype)


def deconv1_bn_relu(z, w_packed, scale, bias, cout):
    n, cin = z.shape
    ncols = w_packed.shape[1]  # 16 * cout
    out = pl.pallas_call(
        _deconv1_kernel,
        out_shape=jax.ShapeDtypeStruct((n, ncols), jnp.bfloat16),
        grid=(1,),
        in_specs=[
            pl.BlockSpec((n, cin), lambda i: (0, 0)),
            pl.BlockSpec((cin, ncols), lambda i: (0, 0)),
            pl.BlockSpec((1, ncols), lambda i: (0, 0)),
            pl.BlockSpec((1, ncols), lambda i: (0, 0)),
        ],
        out_specs=pl.BlockSpec((n, ncols), lambda i: (0, 0)),
    )(z, w_packed, scale, bias)
    return out.reshape(n, 4, 4, cout)


# ----------------------------------------------------------------------------
# ConvTranspose2d(k=4, s=2, p=1) + folded BN + ReLU/tanh.
# Grid = (batch, output-row parity). One im2col matmul per step.
# ----------------------------------------------------------------------------
def _deconv_up_kernel(x_ref, w_ref, s_ref, b_ref, o_ref, *, H, W, use_tanh):
    # x_ref: (1, H+2, W+2, Cin)  zero-padded bf16 input (one batch element)
    # w_ref: (1, 6*Cin, 2*Cp)    parity-packed bf16 weights for this row parity
    # s_ref/b_ref: (1, 2*Cp)     folded BN scale/bias (f32)
    # o_ref: (1, H, W*2*Cp)      output rows 2m+py, row flattened as (w, px, c)
    cin = x_ref.shape[-1]
    py = pl.program_id(1)
    # im2col: two input-row bands for this parity x three column shifts,
    # fused into a single big-K MXU matmul (K = 6*Cin), f32 accumulation.
    patches = [
        x_ref[0, pl.ds(py + a, H), d:d + W, :]      # (H, W, Cin)
        for a in range(2) for d in range(3)
    ]
    im2col = jnp.concatenate(patches, axis=-1).reshape(H * W, 6 * cin)
    acc = jnp.dot(im2col, w_ref[0], preferred_element_type=jnp.float32)
    acc = acc * s_ref[...] + b_ref[...]             # folded BN (eval) + conv bias
    acc = jnp.tanh(acc) if use_tanh else jnp.maximum(acc, 0.0)
    o_ref[0] = acc.reshape(H, o_ref.shape[-1]).astype(o_ref.dtype)


def deconv4x4_s2_bn_act(x_nhwc, w_packed, scale2, bias2, cout, *, use_tanh,
                        out_dtype):
    n, h, ww, cin = x_nhwc.shape
    cp = scale2.shape[-1] // 2          # Cout possibly padded for lane density
    slab = ww * 2 * cp                  # lane-dense output slab (multiple of 128)
    # TODO(synk): jnp.pad round-trips a padded activation copy through HBM; could
    # be avoided with boundary-masked in-kernel windows (cheap at these sizes).
    xp = jnp.pad(x_nhwc, ((0, 0), (1, 1), (1, 1), (0, 0)))
    kernel = functools.partial(_deconv_up_kernel, H=h, W=ww, use_tanh=use_tanh)
    out = pl.pallas_call(
        kernel,
        out_shape=jax.ShapeDtypeStruct((n, h, 2 * slab), out_dtype),
        grid=(n, 2),
        in_specs=[
            pl.BlockSpec((1, h + 2, ww + 2, cin), lambda i, p: (i, 0, 0, 0)),
            pl.BlockSpec((1, 6 * cin, 2 * cp), lambda i, p: (p, 0, 0)),
            pl.BlockSpec((1, 2 * cp), lambda i, p: (0, 0)),
            pl.BlockSpec((1, 2 * cp), lambda i, p: (0, 0)),
        ],
        out_specs=pl.BlockSpec((1, h, slab), lambda i, p: (i, 0, p)),
        compiler_params=pltpu.CompilerParams(
            dimension_semantics=("parallel", "parallel")),
    )(xp, w_packed, scale2, bias2)
    # (N, H, 2, W, 2, Cp) interleave is a free reshape of the slab layout.
    out = out.reshape(n, 2 * h, 2 * ww, cp)
    return out[..., :cout] if cp != cout else out


# ----------------------------------------------------------------------------
# Parameter construction (deterministic, synthetic) + weight packing.
# ----------------------------------------------------------------------------
def _pack_deconv1_weight(w):
    # (Cin, Cout, 4, 4) -> (Cin, 16*Cout) bf16, columns ordered (oy, ox, c).
    w = np.asarray(w, np.float32)
    cin, cout = w.shape[0], w.shape[1]
    return jnp.asarray(np.transpose(w, (0, 2, 3, 1)).reshape(cin, 16 * cout),
                       jnp.bfloat16)


def _pack_up_weight(w, cp):
    # (Cin, Cout, 4, 4) -> (2, 6*Cin, 2*cp) bf16, one slab per output-row parity.
    w = np.asarray(w, np.float32)
    cin, cout = w.shape[0], w.shape[1]
    packed = np.zeros((2, 6 * cin, 2 * cp), np.float32)
    for py in range(2):
        for a, (_, ky) in enumerate(_DY_TAPS[py]):
            for d in range(3):
                dx = d - 1
                j = a * 3 + d
                for px in range(2):
                    kx = _DX_TAPS[px].get(dx)
                    if kx is None:
                        continue
                    packed[py, j * cin:(j + 1) * cin,
                           px * cp:px * cp + cout] = w[:, :, ky, kx]
    return jnp.asarray(packed, jnp.bfloat16)


def init_params(key, d=16):
    eps = 1e-5
    layer_specs = [
        (100, d * 8, 1, 0, True),   # deconv1 + BN
        (d * 8, d * 4, 2, 1, True),
        (d * 4, d * 2, 2, 1, True),
        (d * 2, d, 2, 1, True),
        (d, 3, 2, 1, False),        # deconv5, no BN, tanh
    ]
    params = []
    for (cin, cout, stride, pad, has_bn), k in zip(
            layer_specs, jax.random.split(key, len(layer_specs))):
        k1, k2, k3, k4, k5, k6 = jax.random.split(k, 6)
        w = (1.0 / np.sqrt(cin * 16.0)) * jax.random.normal(
            k1, (cin, cout, 4, 4), jnp.float32)
        conv_b = 0.01 * jax.random.normal(k2, (cout,), jnp.float32)
        if has_bn:
            gamma = 1.0 + 0.1 * jax.random.normal(k3, (cout,), jnp.float32)
            beta = 0.01 * jax.random.normal(k4, (cout,), jnp.float32)
            mean = 0.05 * jax.random.normal(k5, (cout,), jnp.float32)
            var = 0.9 + 0.1 * jnp.abs(jax.random.normal(k6, (cout,), jnp.float32))
            scale = gamma / jnp.sqrt(var + eps)
            bias = beta + (conv_b - mean) * scale
        else:
            scale = jnp.ones((cout,), jnp.float32)
            bias = conv_b
        params.append(dict(w=w, scale=scale, bias=bias,
                           stride=stride, pad=pad, cout=cout))
    return params


def prepare_kernel_params(params):
    kp = []
    p0 = params[0]
    kp.append(dict(w=_pack_deconv1_weight(p0["w"]),
                   scale=jnp.tile(p0["scale"], 16)[None, :],
                   bias=jnp.tile(p0["bias"], 16)[None, :],
                   cout=p0["cout"]))
    spatial = 4                                   # input width of each up layer
    for p in params[1:]:
        cout = p["cout"]
        cp = cout
        while (2 * spatial * cp) % 128 != 0:      # lane-dense output slab
            cp += 1
        s = np.zeros((cp,), np.float32); s[:cout] = np.asarray(p["scale"])
        b = np.zeros((cp,), np.float32); b[:cout] = np.asarray(p["bias"])
        kp.append(dict(w=_pack_up_weight(p["w"], cp),
                       scale=jnp.asarray(np.tile(s, 2))[None, :],
                       bias=jnp.asarray(np.tile(b, 2))[None, :],
                       cout=cout))
        spatial *= 2
    return kp


# ----------------------------------------------------------------------------
# Generator.forward (kernel path) and pure-JAX reference.
# ----------------------------------------------------------------------------
def generator_forward(kparams, z_nchw):
    n = z_nchw.shape[0]
    z = z_nchw.reshape(n, -1).astype(jnp.bfloat16)      # (N, 100), 1x1 spatial
    p0 = kparams[0]
    x = deconv1_bn_relu(z, p0["w"], p0["scale"], p0["bias"], p0["cout"])
    for li, p in enumerate(kparams[1:]):
        last = li == len(kparams) - 2
        x = deconv4x4_s2_bn_act(
            x, p["w"], p["scale"], p["bias"], p["cout"],
            use_tanh=last,
            out_dtype=jnp.float32 if last else jnp.bfloat16)
    return jnp.transpose(x, (0, 3, 1, 2))               # NHWC -> NCHW


def _deconv_ref(x_nhwc, w, stride, pad):
    # ConvTranspose2d == lhs-dilated conv with spatially flipped HWIO kernel.
    k = w.shape[2]
    w_hwio = jnp.transpose(w[:, :, ::-1, ::-1], (2, 3, 0, 1)).astype(jnp.bfloat16)
    return jax.lax.conv_general_dilated(
        x_nhwc, w_hwio, window_strides=(1, 1),
        padding=[(k - 1 - pad, k - 1 - pad), (k - 1 - pad, k - 1 - pad)],
        lhs_dilation=(stride, stride),
        dimension_numbers=("NHWC", "HWIO", "NHWC"),
        preferred_element_type=jnp.float32)


def generator_forward_reference(params, z_nchw):
    x = jnp.transpose(z_nchw, (0, 2, 3, 1)).astype(jnp.bfloat16)
    for li, p in enumerate(params):
        last = li == len(params) - 1
        y = _deconv_ref(x, p["w"], p["stride"], p["pad"])
        y = y * p["scale"][None, None, None, :] + p["bias"][None, None, None, :]
        y = jnp.tanh(y) if last else jnp.maximum(y, 0.0)
        x = y if last else y.astype(jnp.bfloat16)
    return jnp.transpose(x, (0, 3, 1, 2))


if __name__ == "__main__":
    D = 16   # module default is d=128; reduced for a small smoke test
    key = jax.random.PRNGKey(0)
    kz, kparam = jax.random.split(key)
    z = jax.random.normal(kz, (2, 100, 1, 1), jnp.float32)

    params = init_params(kparam, d=D)
    kparams = prepare_kernel_params(params)

    out = jax.block_until_ready(generator_forward(kparams, z))
    assert out.shape == (2, 3, 64, 64), out.shape

    ref = jax.block_until_ready(generator_forward_reference(params, z))
    err = float(jnp.max(jnp.abs(out - ref)))
    assert err < 2e-2, f"mismatch vs reference: {err}"

    print("KERNEL_OK")
</pallas_src>

<mosaic_0001>
module attributes {stable_mosaic.version = 11 : i64} {
  func.func @_deconv1_kernel(%arg0: i32, %arg1: memref<2x100xbf16, #tpu.memory_space<vmem>>, %arg2: memref<100x2048xbf16, #tpu.memory_space<vmem>>, %arg3: memref<1x2048xf32, #tpu.memory_space<vmem>>, %arg4: memref<1x2048xf32, #tpu.memory_space<vmem>>, %arg5: memref<2x2048xbf16, #tpu.memory_space<vmem>>) attributes {dimension_semantics = [#tpu.dimension_semantics<arbitrary>], iteration_bounds = array<i64: 1>, scalar_prefetch = 0 : i64, scratch_operands = 0 : i64, tpu.core_type = #tpu.core_type<tc>, window_params = [{pipeline_mode = #tpu.pipeline_mode<synchronous>, transform_indices = @transform_0, window_bounds = array<i64: 2, 100>}, {pipeline_mode = #tpu.pipeline_mode<synchronous>, transform_indices = @transform_1, window_bounds = array<i64: 100, 2048>}, {pipeline_mode = #tpu.pipeline_mode<synchronous>, transform_indices = @transform_2, window_bounds = array<i64: 1, 2048>}, {pipeline_mode = #tpu.pipeline_mode<synchronous>, transform_indices = @transform_3, window_bounds = array<i64: 1, 2048>}, {pipeline_mode = #tpu.pipeline_mode<synchronous>, transform_indices = @transform_4, window_bounds = array<i64: 2, 2048>}]} {
    %c0 = arith.constant 0 : index
    %c0_0 = arith.constant 0 : index
    %0 = vector.load %arg1[%c0, %c0_0] : memref<2x100xbf16, #tpu.memory_space<vmem>>, vector<2x100xbf16>
    %c0_1 = arith.constant 0 : index
    %c0_2 = arith.constant 0 : index
    %1 = vector.load %arg2[%c0_1, %c0_2] : memref<100x2048xbf16, #tpu.memory_space<vmem>>, vector<100x2048xbf16>
    %cst = arith.constant dense<0.000000e+00> : vector<2x2048xf32>
    %2 = tpu.matmul %0, %1, %cst {dimension_numbers = #tpu.dot_dimension_numbers<[1], [0], [0], [1], [0, 0, 1, 1], [], []>} : vector<2x100xbf16>, vector<100x2048xbf16>, vector<2x2048xf32> -> vector<2x2048xf32>
    %c0_3 = arith.constant 0 : index
    %c0_4 = arith.constant 0 : index
    %3 = vector.load %arg3[%c0_3, %c0_4] : memref<1x2048xf32, #tpu.memory_space<vmem>>, vector<1x2048xf32>
    %4 = vector.broadcast %3 : vector<1x2048xf32> to vector<2x2048xf32>
    %5 = arith.mulf %2, %4 : vector<2x2048xf32>
    %c0_5 = arith.constant 0 : index
    %c0_6 = arith.constant 0 : index
    %6 = vector.load %arg4[%c0_5, %c0_6] : memref<1x2048xf32, #tpu.memory_space<vmem>>, vector<1x2048xf32>
    %7 = vector.broadcast %6 : vector<1x2048xf32> to vector<2x2048xf32>
    %8 = arith.addf %5, %7 : vector<2x2048xf32>
    %cst_7 = arith.constant 0.000000e+00 : f32
    %9 = vector.broadcast %cst_7 : f32 to vector<2x2048xf32>
    %10 = arith.maximumf %8, %9 : vector<2x2048xf32>
    %11 = arith.truncf %10 : vector<2x2048xf32> to vector<2x2048xbf16>
    %c0_8 = arith.constant 0 : index
    %c0_9 = arith.constant 0 : index
    %12 = vector.load %arg5[%c0_8, %c0_9] : memref<2x2048xbf16, #tpu.memory_space<vmem>>, vector<2x2048xbf16>
    tpu.vector_store %arg5[%c0_8, %c0_9], %11 {strides = array<i32>} : memref<2x2048xbf16, #tpu.memory_space<vmem>>, vector<2x2048xbf16>,
    return
  }
  func.func @transform_0(%arg0: i32) -> (i32, i32) {
    %c0_i32 = arith.constant 0 : i32
    %c0_i32_0 = arith.constant 0 : i32
    %c0_i32_1 = arith.constant 0 : i32
    return %c0_i32, %c0_i32_0 : i32, i32
  }
  func.func @transform_1(%arg0: i32) -> (i32, i32) {
    %c0_i32 = arith.constant 0 : i32
    %c0_i32_0 = arith.constant 0 : i32
    %c0_i32_1 = arith.constant 0 : i32
    return %c0_i32, %c0_i32_0 : i32, i32
  }
  func.func @transform_2(%arg0: i32) -> (i32, i32) {
    %c0_i32 = arith.constant 0 : i32
    %c0_i32_0 = arith.constant 0 : i32
    %c0_i32_1 = arith.constant 0 : i32
    return %c0_i32, %c0_i32_0 : i32, i32
  }
  func.func @transform_3(%arg0: i32) -> (i32, i32) {
    %c0_i32 = arith.constant 0 : i32
    %c0_i32_0 = arith.constant 0 : i32
    %c0_i32_1 = arith.constant 0 : i32
    return %c0_i32, %c0_i32_0 : i32, i32
  }
  func.func @transform_4(%arg0: i32) -> (i32, i32) {
    %c0_i32 = arith.constant 0 : i32
    %c0_i32_0 = arith.constant 0 : i32
    %c0_i32_1 = arith.constant 0 : i32
    return %c0_i32, %c0_i32_0 : i32, i32
  }
}

</mosaic_0001>

<llo_original>
// kernel: tpu_custom_call.1
$region0: #{tpu_custom_call.1}
  #allocation0 [shape = 'u32[]', space=smem, size = 0x4, offset = 0x4, fixed_abs, tag = 'smem constant byte address 0x4 - core index']
  #allocation1 [shape = 'u32[72,128]{1,0:T(1,128)}', space=vmem, size = 0x9000, scoped, tag = 'internal scratch']
  %s0 = inlined_call_operand.hbm [shape: bf16[2,100], index: 0, kind: input, shape index: {}]
  %s1 = inlined_call_operand.hbm [shape: bf16[100,2048], index: 1, kind: input, shape index: {}]
  %s2 = inlined_call_operand.hbm [shape: f32[1,2048], index: 2, kind: input, shape index: {}]
  %s3 = inlined_call_operand.hbm [shape: f32[1,2048], index: 3, kind: input, shape index: {}]
  %s4 = inlined_call_operand.hbm [shape: bf16[2,2048], index: 4, kind: output, shape index: {}]
  %s5 = sld [smem:[#allocation0]]
  $region42: #{tpu_custom_call.1} parent=0
    _
  %s7 = ssub.s32 1, %s5
  %s8 = scalar_select 0, %s7, %s5
  $region1: #{tpu_custom_call.1} parent=0
    #allocation2 [shape = 'u8[512]{0}', space=vmem, size = 0x400, scoped, tag = 'input window, operand 0, single buffered']
    #allocation3 [shape = 's32[1]{0}', space=sflag, size = 0x4, scoped, tag = 'scoped memory for tpu_custom_call.1']
    #allocation4 [shape = 's32[1]{0}', space=sflag, size = 0x4, scoped, tag = 'scoped memory for tpu_custom_call.1']
    #allocation5 [shape = 'u8[425984]{0}', space=vmem, size = 0x68000, scoped, tag = 'input window, operand 1, single buffered']
    #allocation6 [shape = 's32[1]{0}', space=sflag, size = 0x4, scoped, tag = 'scoped memory for tpu_custom_call.1']
    #allocation7 [shape = 'u8[8192]{0}', space=vmem, size = 0x2000, scoped, tag = 'input window, operand 2, single buffered']
    #allocation8 [shape = 'u8[8192]{0}', space=vmem, size = 0x2000, scoped, tag = 'input window, operand 3, single buffered']
    #allocation9 [shape = 's32[1]{0}', space=sflag, size = 0x4, scoped, tag = 'scoped memory for tpu_custom_call.1']
    #allocation10 [shape = 'u8[8192]{0}', space=vmem, size = 0x2000, scoped, tag = 'output window, operand 0, single buffered']
    %9 = vsyncpa [#allocation3], 0
    %10 = vsyncpa [#allocation6], 0
    %11 = vsyncpa [#allocation9], 0
    %12 = vsyncpa [#allocation4], 0
    // Predicated region
    $region2: #{tpu_custom_call.1} parent=1 // pred_check
      _
    $region3: #{tpu_custom_call.1} parent=1 // pred_check_branch
      %14 = sbr.rel (0) target = $region5
    $region4: #{tpu_custom_call.1} parent=1 // pred_region
      %16 = vsyncadd [#allocation3], 0
      %s18 = sshll.u32 %s0, 4
      %s19 = int_to_ptr.hbm [resolvable:$true] %s18
      %s20 = sshll.u32 [#allocation2], 4
      %s21 = int_to_ptr.vmem [resolvable:$true] %s20
      %23 = dma.hbm_to_vmem [thread:$0]  %s19, 16, %s21, [#allocation3]
    $region5: #{tpu_custom_call.1} parent=1 // pred_fallthru
      _
    // Predicated region
    $region6: #{tpu_custom_call.1} parent=1 // pred_check
      _
    $region7: #{tpu_custom_call.1} parent=1 // pred_check_branch
      %25 = sbr.rel (0) target = $region9
    $region8: #{tpu_custom_call.1} parent=1 // pred_region
      %27 = vsyncadd [#allocation6], 0
      %s28 = sshll.u32 %s1, 4
      %s29 = int_to_ptr.hbm [resolvable:$true] %s28
      %s30 = sshll.u32 [#allocation5], 4
      %s31 = int_to_ptr.vmem [resolvable:$true] %s30
      %36 = dma.hbm_to_vmem [thread:$0]  %s29, 13312, %s31, [#allocation6], 1024, 1024, 64
    $region9: #{tpu_custom_call.1} parent=1 // pred_fallthru
      _
    // Predicated region
    $region10: #{tpu_custom_call.1} parent=1 // pred_check
      _
    $region11: #{tpu_custom_call.1} parent=1 // pred_check_branch
      %38 = sbr.rel (0) target = $region13
    $region12: #{tpu_custom_call.1} parent=1 // pred_region
      %40 = vsyncadd [#allocation6], 0
      %s42 = sshll.u32 %s2, 4
      %s43 = int_to_ptr.hbm [resolvable:$true] %s42
      %s44 = sshll.u32 [#allocation7], 4
      %s45 = int_to_ptr.vmem [resolvable:$true] %s44
      %47 = dma.hbm_to_vmem [thread:$0]  %s43, 256, %s45, [#allocation6]
    $region13: #{tpu_custom_call.1} parent=1 // pred_fallthru
      _
    // Predicated region
    $region14: #{tpu_custom_call.1} parent=1 // pred_check
      _
    $region15: #{tpu_custom_call.1} parent=1 // pred_check_branch
      %49 = sbr.rel (0) target = $region17
    $region16: #{tpu_custom_call.1} parent=1 // pred_region
      %51 = vsyncadd [#allocation9], 0
      %s53 = sshll.u32 %s3, 4
      %s54 = int_to_ptr.hbm [resolvable:$true] %s53
      %s55 = sshll.u32 [#allocation8], 4
      %s56 = int_to_ptr.vmem [resolvable:$true] %s55
      %58 = dma.hbm_to_vmem [thread:$0]  %s54, 256, %s56, [#allocation9]
    $region17: #{tpu_custom_call.1} parent=1 // pred_fallthru
      _
    // Predicated region
    $region18: #{tpu_custom_call.1} parent=1 // pred_check
      _
    $region19: #{tpu_custom_call.1} parent=1 // pred_check_branch
      %60 = sbr.rel (0) target = $region21
    $region20: #{tpu_custom_call.1} parent=1 // pred_region
      %62 = dma.done [#allocation3], 16
    $region21: #{tpu_custom_call.1} parent=1 // pred_fallthru
      _
    // Predicated region
    $region22: #{tpu_custom_call.1} parent=1 // pred_check
      _
    $region23: #{tpu_custom_call.1} parent=1 // pred_check_branch
      %64 = sbr.rel (0) target = $region25
    $region24: #{tpu_custom_call.1} parent=1 // pred_region
      %66 = dma.done [#allocation6], 13312
    $region25: #{tpu_custom_call.1} parent=1 // pred_fallthru
      _
    // Predicated region
    $region26: #{tpu_custom_call.1} parent=1 // pred_check
      _
    $region27: #{tpu_custom_call.1} parent=1 // pred_check_branch
      %68 = sbr.rel (0) target = $region29
    $region28: #{tpu_custom_call.1} parent=1 // pred_region
      %70 = dma.done [#allocation6], 256
    $region29: #{tpu_custom_call.1} parent=1 // pred_fallthru
      _
    // Predicated region
    $region30: #{tpu_custom_call.1} parent=1 // pred_check
      _
    $region31: #{tpu_custom_call.1} parent=1 // pred_check_branch
      %72 = sbr.rel (0) target = $region33
    $region32: #{tpu_custom_call.1} parent=1 // pred_region
      %74 = dma.done [#allocation9], 256
    $region33: #{tpu_custom_call.1} parent=1 // pred_fallthru
      _
    %v76 = vld [vmem:[#allocation2] sm:$0x1]
    %v77 = vld [vmem:[#allocation5] sm:$0xff]
    %v78 = vld [vmem:[#allocation5 + $0x8] sm:$0xff]
    %v79 = vld [vmem:[#allocation5 + $0x10] sm:$0xff]
    %v80 = vld [vmem:[#allocation5 + $0x18] sm:$0xff]
    %v81 = vld [vmem:[#allocation5 + $0x20] sm:$0xff]
    %v82 = vld [vmem:[#allocation5 + $0x28] sm:$0xff]
    %v83 = vld [vmem:[#allocation5 + $0x30] sm:$0xff]
    %v84 = vld [vmem:[#allocation5 + $0x38] sm:$0xff]
    %v85 = vld [vmem:[#allocation5 + $0x40] sm:$0xff]
    %v86 = vld [vmem:[#allocation5 + $0x48] sm:$0xff]
    %v87 = vld [vmem:[#allocation5 + $0x50] sm:$0xff]
    %v88 = vld [vmem:[#allocation5 + $0x58] sm:$0xff]
    %v89 = vld [vmem:[#allocation5 + $0x60] sm:$0xff]
    %v90 = vld [vmem:[#allocation5 + $0x68] sm:$0xff]
    %v91 = vld [vmem:[#allocation5 + $0x70] sm:$0xff]
    %v92 = vld [vmem:[#allocation5 + $0x78] sm:$0xff]
    %v93 = vld [vmem:[#allocation5 + $0x80] sm:$0xff]
    %v94 = vld [vmem:[#allocation5 + $0x88] sm:$0xff]
    %v95 = vld [vmem:[#allocation5 + $0x90] sm:$0xff]
    %v96 = vld [vmem:[#allocation5 + $0x98] sm:$0xff]
    %v97 = vld [vmem:[#allocation5 + $0xa0] sm:$0xff]
    %v98 = vld [vmem:[#allocation5 + $0xa8] sm:$0xff]
    %v99 = vld [vmem:[#allocation5 + $0xb0] sm:$0xff]
    %v100 = vld [vmem:[#allocation5 + $0xb8] sm:$0xff]
    %v101 = vld [vmem:[#allocation5 + $0xc0] sm:$0xff]
    %v102 = vld [vmem:[#allocation5 + $0xc8] sm:$0xff]
    %v103 = vld [vmem:[#allocation5 + $0xd0] sm:$0xff]
    %v104 = vld [vmem:[#allocation5 + $0xd8] sm:$0xff]
    %v105 = vld [vmem:[#allocation5 + $0xe0] sm:$0xff]
    %v106 = vld [vmem:[#allocation5 + $0xe8] sm:$0xff]
    %v107 = vld [vmem:[#allocation5 + $0xf0] sm:$0xff]
    %v108 = vld [vmem:[#allocation5 + $0xf8] sm:$0xff]
    %v109 = vld [vmem:[#allocation5 + $0x100] sm:$0xff]
    %v110 = vld [vmem:[#allocation5 + $0x108] sm:$0xff]
    %v111 = vld [vmem:[#allocation5 + $0x110] sm:$0xff]
    %v112 = vld [vmem:[#allocation5 + $0x118] sm:$0xff]
    %v113 = vld [vmem:[#allocation5 + $0x120] sm:$0xff]
    %v114 = vld [vmem:[#allocation5 + $0x128] sm:$0xff]
    %v115 = vld [vmem:[#allocation5 + $0x130] sm:$0xff]
    %v116 = vld [vmem:[#allocation5 + $0x138] sm:$0xff]
    %v117 = vld [vmem:[#allocation5 + $0x140] sm:$0xff]
    %v118 = vld [vmem:[#allocation5 + $0x148] sm:$0xff]
    %v119 = vld [vmem:[#allocation5 + $0x150] sm:$0xff]
    %v120 = vld [vmem:[#allocation5 + $0x158] sm:$0xff]
    %v121 = vld [vmem:[#allocation5 + $0x160] sm:$0xff]
    %v122 = vld [vmem:[#allocation5 + $0x168] sm:$0xff]
    %v123 = vld [vmem:[#allocation5 + $0x170] sm:$0xff]
    %v124 = vld [vmem:[#allocation5 + $0x178] sm:$0xff]
    %v125 = vld [vmem:[#allocation5 + $0x180] sm:$0xff]
    %v126 = vld [vmem:[#allocation5 + $0x188] sm:$0xff]
    %v127 = vld [vmem:[#allocation5 + $0x190] sm:$0xff]
    %v128 = vld [vmem:[#allocation5 + $0x198] sm:$0xff]
    %v129 = vld [vmem:[#allocation5 + $0x1a0] sm:$0xff]
    %v130 = vld [vmem:[#allocation5 + $0x1a8] sm:$0xff]
    %v131 = vld [vmem:[#allocation5 + $0x1b0] sm:$0xff]
    %v132 = vld [vmem:[#allocation5 + $0x1b8] sm:$0xff]
    %v133 = vld [vmem:[#allocation5 + $0x1c0] sm:$0xff]
    %v134 = vld [vmem:[#allocation5 + $0x1c8] sm:$0xff]
    %v135 = vld [vmem:[#allocation5 + $0x1d0] sm:$0xff]
    %v136 = vld [vmem:[#allocation5 + $0x1d8] sm:$0xff]
    %v137 = vld [vmem:[#allocation5 + $0x1e0] sm:$0xff]
    %v138 = vld [vmem:[#allocation5 + $0x1e8] sm:$0xff]
    %v139 = vld [vmem:[#allocation5 + $0x1f0] sm:$0xff]
    %v140 = vld [vmem:[#allocation5 + $0x1f8] sm:$0xff]
    %v141 = vld [vmem:[#allocation5 + $0x200] sm:$0xff]
    %v142 = vld [vmem:[#allocation5 + $0x208] sm:$0xff]
    %v143 = vld [vmem:[#allocation5 + $0x210] sm:$0xff]
    %v144 = vld [vmem:[#allocation5 + $0x218] sm:$0xff]
    %v145 = vld [vmem:[#allocation5 + $0x220] sm:$0xff]
    %v146 = vld [vmem:[#allocation5 + $0x228] sm:$0xff]
    %v147 = vld [vmem:[#allocation5 + $0x230] sm:$0xff]
    %v148 = vld [vmem:[#allocation5 + $0x238] sm:$0xff]
    %v149 = vld [vmem:[#allocation5 + $0x240] sm:$0xff]
    %v150 = vld [vmem:[#allocation5 + $0x248] sm:$0xff]
    %v151 = vld [vmem:[#allocation5 + $0x250] sm:$0xff]
    %v152 = vld [vmem:[#allocation5 + $0x258] sm:$0xff]
    %v153 = vld [vmem:[#allocation5 + $0x260] sm:$0xff]
    %v154 = vld [vmem:[#allocation5 + $0x268] sm:$0xff]
    %v155 = vld [vmem:[#allocation5 + $0x270] sm:$0xff]
    %v156 = vld [vmem:[#allocation5 + $0x278] sm:$0xff]
    %v157 = vld [vmem:[#allocation5 + $0x280] sm:$0xff]
    %v158 = vld [vmem:[#allocation5 + $0x288] sm:$0xff]
    %v159 = vld [vmem:[#allocation5 + $0x290] sm:$0xff]
    %v160 = vld [vmem:[#allocation5 + $0x298] sm:$0xff]
    %v161 = vld [vmem:[#allocation5 + $0x2a0] sm:$0xff]
    %v162 = vld [vmem:[#allocation5 + $0x2a8] sm:$0xff]
    %v163 = vld [vmem:[#allocation5 + $0x2b0] sm:$0xff]
    %v164 = vld [vmem:[#allocation5 + $0x2b8] sm:$0xff]
    %v165 = vld [vmem:[#allocation5 + $0x2c0] sm:$0xff]
    %v166 = vld [vmem:[#allocation5 + $0x2c8] sm:$0xff]
    %v167 = vld [vmem:[#allocation5 + $0x2d0] sm:$0xff]
    %v168 = vld [vmem:[#allocation5 + $0x2d8] sm:$0xff]
    %v169 = vld [vmem:[#allocation5 + $0x2e0] sm:$0xff]
    %v170 = vld [vmem:[#allocation5 + $0x2e8] sm:$0xff]
    %v171 = vld [vmem:[#allocation5 + $0x2f0] sm:$0xff]
    %v172 = vld [vmem:[#allocation5 + $0x2f8] sm:$0xff]
    %v173 = vld [vmem:[#allocation5 + $0x300] sm:$0x33]
    %v174 = vld [vmem:[#allocation5 + $0x308] sm:$0x33]
    %v175 = vld [vmem:[#allocation5 + $0x310] sm:$0x33]
    %v176 = vld [vmem:[#allocation5 + $0x318] sm:$0x33]
    %v177 = vld [vmem:[#allocation5 + $0x320] sm:$0x33]
    %v178 = vld [vmem:[#allocation5 + $0x328] sm:$0x33]
    %v179 = vld [vmem:[#allocation5 + $0x330] sm:$0x33]
    %v180 = vld [vmem:[#allocation5 + $0x338] sm:$0x33]
    %v285 = vunpack.c.l.b16 %v77
    %v286 = vunpack.c.h.b16 %v77
    %v287 = vunpack.c.l.b16 %v78
    %v288 = vunpack.c.h.b16 %v78
    %v289 = vunpack.c.l.b16 %v79
    %v290 = vunpack.c.h.b16 %v79
    %v291 = vunpack.c.l.b16 %v80
    %v292 = vunpack.c.h.b16 %v80
    %v293 = vunpack.c.l.b16 %v81
    %v294 = vunpack.c.h.b16 %v81
    %v295 = vunpack.c.l.b16 %v82
    %v296 = vunpack.c.h.b16 %v82
    %v297 = vunpack.c.l.b16 %v83
    %v298 = vunpack.c.h.b16 %v83
    %v299 = vunpack.c.l.b16 %v84
    %v300 = vunpack.c.h.b16 %v84
    %v301 = vunpack.c.l.b16 %v85
    %v302 = vunpack.c.h.b16 %v85
    %v303 = vunpack.c.l.b16 %v86
    %v304 = vunpack.c.h.b16 %v86
    %v305 = vunpack.c.l.b16 %v87
    %v306 = vunpack.c.h.b16 %v87
    %v307 = vunpack.c.l.b16 %v88
    %v308 = vunpack.c.h.b16 %v88
    %v309 = vunpack.c.l.b16 %v89
    %v310 = vunpack.c.h.b16 %v89
    %v311 = vunpack.c.l.b16 %v90
    %v312 = vunpack.c.h.b16 %v90
    %v313 = vunpack.c.l.b16 %v91
    %v314 = vunpack.c.h.b16 %v91
    %v315 = vunpack.c.l.b16 %v92
    %v316 = vunpack.c.h.b16 %v92
    %v317 = vunpack.c.l.b16 %v93
    %v318 = vunpack.c.h.b16 %v93
    %v319 = vunpack.c.l.b16 %v94
    %v320 = vunpack.c.h.b16 %v94
    %v321 = vunpack.c.l.b16 %v95
    %v322 = vunpack.c.h.b16 %v95
    %v323 = vunpack.c.l.b16 %v96
    %v324 = vunpack.c.h.b16 %v96
    %v325 = vunpack.c.l.b16 %v97
    %v326 = vunpack.c.h.b16 %v97
    %v327 = vunpack.c.l.b16 %v98
    %v328 = vunpack.c.h.b16 %v98
    %v329 = vunpack.c.l.b16 %v99
    %v330 = vunpack.c.h.b16 %v99
    %v331 = vunpack.c.l.b16 %v100
    %v332 = vunpack.c.h.b16 %v100
    %v333 = vunpack.c.l.b16 %v101
    %v334 = vunpack.c.h.b16 %v101
    %v335 = vunpack.c.l.b16 %v102
    %v336 = vunpack.c.h.b16 %v102
    %v337 = vunpack.c.l.b16 %v103
    %v338 = vunpack.c.h.b16 %v103
    %v339 = vunpack.c.l.b16 %v104
    %v340 = vunpack.c.h.b16 %v104
    %v341 = vunpack.c.l.b16 %v105
    %v342 = vunpack.c.h.b16 %v105
    %v343 = vunpack.c.l.b16 %v106
    %v344 = vunpack.c.h.b16 %v106
    %v345 = vunpack.c.l.b16 %v107
    %v346 = vunpack.c.h.b16 %v107
    %v347 = vunpack.c.l.b16 %v108
    %v348 = vunpack.c.h.b16 %v108
    %v349 = vunpack.c.l.b16 %v109
    %v350 = vunpack.c.h.b16 %v109
    %v351 = vunpack.c.l.b16 %v110
    %v352 = vunpack.c.h.b16 %v110
    %v353 = vunpack.c.l.b16 %v111
    %v354 = vunpack.c.h.b16 %v111
    %v355 = vunpack.c.l.b16 %v112
    %v356 = vunpack.c.h.b16 %v112
    %v357 = vunpack.c.l.b16 %v113
    %v358 = vunpack.c.h.b16 %v113
    %v359 = vunpack.c.l.b16 %v114
    %v360 = vunpack.c.h.b16 %v114
    %v361 = vunpack.c.l.b16 %v115
    %v362 = vunpack.c.h.b16 %v115
    %v363 = vunpack.c.l.b16 %v116
    %v364 = vunpack.c.h.b16 %v116
    %v365 = vunpack.c.l.b16 %v117
    %v366 = vunpack.c.h.b16 %v117
    %v367 = vunpack.c.l.b16 %v118
    %v368 = vunpack.c.h.b16 %v118
    %v369 = vunpack.c.l.b16 %v119
    %v370 = vunpack.c.h.b16 %v119
    %v371 = vunpack.c.l.b16 %v120
    %v372 = vunpack.c.h.b16 %v120
    %v373 = vunpack.c.l.b16 %v121
    %v374 = vunpack.c.h.b16 %v121
    %v375 = vunpack.c.l.b16 %v122
    %v376 = vunpack.c.h.b16 %v122
    %v377 = vunpack.c.l.b16 %v123
    %v378 = vunpack.c.h.b16 %v123
    %v379 = vunpack.c.l.b16 %v124
    %v380 = vunpack.c.h.b16 %v124
    %v381 = vunpack.c.l.b16 %v125
    %v382 = vunpack.c.h.b16 %v125
    %v383 = vunpack.c.l.b16 %v126
    %v384 = vunpack.c.h.b16 %v126
    %v385 = vunpack.c.l.b16 %v127
    %v386 = vunpack.c.h.b16 %v127
    %v387 = vunpack.c.l.b16 %v128
    %v388 = vunpack.c.h.b16 %v128
    %v389 = vunpack.c.l.b16 %v129
    %v390 = vunpack.c.h.b16 %v129
    %v391 = vunpack.c.l.b16 %v130
    %v392 = vunpack.c.h.b16 %v130
    %v393 = vunpack.c.l.b16 %v131
    %v394 = vunpack.c.h.b16 %v131
    %v395 = vunpack.c.l.b16 %v132
    %v396 = vunpack.c.h.b16 %v132
    %v397 = vunpack.c.l.b16 %v133
    %v398 = vunpack.c.h.b16 %v133
    %v399 = vunpack.c.l.b16 %v134
    %v400 = vunpack.c.h.b16 %v134
    %v401 = vunpack.c.l.b16 %v135
    %v402 = vunpack.c.h.b16 %v135
    %v403 = vunpack.c.l.b16 %v136
    %v404 = vunpack.c.h.b16 %v136
    %v405 = vunpack.c.l.b16 %v137
    %v406 = vunpack.c.h.b16 %v137
    %v407 = vunpack.c.l.b16 %v138
    %v408 = vunpack.c.h.b16 %v138
    %v409 = vunpack.c.l.b16 %v139
    %v410 = vunpack.c.h.b16 %v139
    %v411 = vunpack.c.l.b16 %v140
    %v412 = vunpack.c.h.b16 %v140
    %v413 = vunpack.c.l.b16 %v141
    %v414 = vunpack.c.h.b16 %v141
    %v415 = vunpack.c.l.b16 %v142
    %v416 = vunpack.c.h.b16 %v142
    %v417 = vunpack.c.l.b16 %v143
    %v418 = vunpack.c.h.b16 %v143
    %v419 = vunpack.c.l.b16 %v144
    %v420 = vunpack.c.h.b16 %v144
    %v421 = vunpack.c.l.b16 %v145
    %v422 = vunpack.c.h.b16 %v145
    %v423 = vunpack.c.l.b16 %v146
    %v424 = vunpack.c.h.b16 %v146
    %v425 = vunpack.c.l.b16 %v147
    %v426 = vunpack.c.h.b16 %v147
    %v427 = vunpack.c.l.b16 %v148
    %v428 = vunpack.c.h.b16 %v148
    %v429 = vunpack.c.l.b16 %v149
    %v430 = vunpack.c.h.b16 %v149
    %v431 = vunpack.c.l.b16 %v150
    %v432 = vunpack.c.h.b16 %v150
    %v433 = vunpack.c.l.b16 %v151
    %v434 = vunpack.c.h.b16 %v151
    %v435 = vunpack.c.l.b16 %v152
    %v436 = vunpack.c.h.b16 %v152
    %v437 = vunpack.c.l.b16 %v153
    %v438 = vunpack.c.h.b16 %v153
    %v439 = vunpack.c.l.b16 %v154
    %v440 = vunpack.c.h.b16 %v154
    %v441 = vunpack.c.l.b16 %v155
    %v442 = vunpack.c.h.b16 %v155
    %v443 = vunpack.c.l.b16 %v156
    %v444 = vunpack.c.h.b16 %v156
    %v445 = vunpack.c.l.b16 %v157
    %v446 = vunpack.c.h.b16 %v157
    %v447 = vunpack.c.l.b16 %v158
    %v448 = vunpack.c.h.b16 %v158
    %v449 = vunpack.c.l.b16 %v159
    %v450 = vunpack.c.h.b16 %v159
    %v451 = vunpack.c.l.b16 %v160
    %v452 = vunpack.c.h.b16 %v160
    %v453 = vunpack.c.l.b16 %v161
    %v454 = vunpack.c.h.b16 %v161
    %v455 = vunpack.c.l.b16 %v162
    %v456 = vunpack.c.h.b16 %v162
    %v457 = vunpack.c.l.b16 %v163
    %v458 = vunpack.c.h.b16 %v163
    %v459 = vunpack.c.l.b16 %v164
    %v460 = vunpack.c.h.b16 %v164
    %v461 = vunpack.c.l.b16 %v165
    %v462 = vunpack.c.h.b16 %v165
    %v463 = vunpack.c.l.b16 %v166
    %v464 = vunpack.c.h.b16 %v166
    %v465 = vunpack.c.l.b16 %v167
    %v466 = vunpack.c.h.b16 %v167
    %v467 = vunpack.c.l.b16 %v168
    %v468 = vunpack.c.h.b16 %v168
    %v469 = vunpack.c.l.b16 %v169
    %v470 = vunpack.c.h.b16 %v169
    %v471 = vunpack.c.l.b16 %v170
    %v472 = vunpack.c.h.b16 %v170
    %v473 = vunpack.c.l.b16 %v171
    %v474 = vunpack.c.h.b16 %v171
    %v475 = vunpack.c.l.b16 %v172
    %v476 = vunpack.c.h.b16 %v172
    %v477 = vunpack.c.l.b16 %v173
    %v478 = vunpack.c.h.b16 %v173
    %v479 = vunpack.c.l.b16 %v174
    %v480 = vunpack.c.h.b16 %v174
    %v481 = vunpack.c.l.b16 %v175
    %v482 = vunpack.c.h.b16 %v175
    %v483 = vunpack.c.l.b16 %v176
    %v484 = vunpack.c.h.b16 %v176
    %v485 = vunpack.c.l.b16 %v177
    %v486 = vunpack.c.h.b16 %v177
    %v487 = vunpack.c.l.b16 %v178
    %v488 = vunpack.c.h.b16 %v178
    %v489 = vunpack.c.l.b16 %v179
    %v490 = vunpack.c.h.b16 %v179
    %v491 = vunpack.c.l.b16 %v180
    %v492 = vunpack.c.h.b16 %v180
    %v493 = vpack.c.b16 %v301, %v285
    %v494 = vpack.c.b16 %v302, %v286
    %v495 = vpack.c.b16 %v303, %v287
    %v496 = vpack.c.b16 %v304, %v288
    %v497 = vpack.c.b16 %v305, %v289
    %v498 = vpack.c.b16 %v306, %v290
    %v499 = vpack.c.b16 %v307, %v291
    %v500 = vpack.c.b16 %v308, %v292
    %v501 = vpack.c.b16 %v309, %v293
    %v502 = vpack.c.b16 %v310, %v294
    %v503 = vpack.c.b16 %v311, %v295
    %v504 = vpack.c.b16 %v312, %v296
    %v505 = vpack.c.b16 %v313, %v297
    %v506 = vpack.c.b16 %v314, %v298
    %v507 = vpack.c.b16 %v315, %v299
    %v508 = vpack.c.b16 %v316, %v300
    %v509 = vpack.c.b16 %v333, %v317
    %v510 = vpack.c.b16 %v334, %v318
    %v511 = vpack.c.b16 %v335, %v319
    %v512 = vpack.c.b16 %v336, %v320
    %v513 = vpack.c.b16 %v337, %v321
    %v514 = vpack.c.b16 %v338, %v322
    %v515 = vpack.c.b16 %v339, %v323
    %v516 = vpack.c.b16 %v340, %v324
    %v517 = vpack.c.b16 %v341, %v325
    %v518 = vpack.c.b16 %v342, %v326
    %v519 = vpack.c.b16 %v343, %v327
    %v520 = vpack.c.b16 %v344, %v328
    %v521 = vpack.c.b16 %v345, %v329
    %v522 = vpack.c.b16 %v346, %v330
    %v523 = vpack.c.b16 %v347, %v331
    %v524 = vpack.c.b16 %v348, %v332
    %v525 = vpack.c.b16 %v365, %v349
    %v526 = vpack.c.b16 %v366, %v350
    %v527 = vpack.c.b16 %v367, %v351
    %v528 = vpack.c.b16 %v368, %v352
    %v529 = vpack.c.b16 %v369, %v353
    %v530 = vpack.c.b16 %v370, %v354
    %v531 = vpack.c.b16 %v371, %v355
    %v532 = vpack.c.b16 %v372, %v356
    %v533 = vpack.c.b16 %v373, %v357
    %v534 = vpack.c.b16 %v374, %v358
    %v535 = vpack.c.b16 %v375, %v359
    %v536 = vpack.c.b16 %v376, %v360
    %v537 = vpack.c.b16 %v377, %v361
    %v538 = vpack.c.b16 %v378, %v362
    %v539 = vpack.c.b16 %v379, %v363
    %v540 = vpack.c.b16 %v380, %v364
    %v541 = vpack.c.b16 %v397, %v381
    %v542 = vpack.c.b16 %v398, %v382
    %v543 = vpack.c.b16 %v399, %v383
    %v544 = vpack.c.b16 %v400, %v384
    %v545 = vpack.c.b16 %v401, %v385
    %v546 = vpack.c.b16 %v402, %v386
    %v547 = vpack.c.b16 %v403, %v387
    %v548 = vpack.c.b16 %v404, %v388
    %v549 = vpack.c.b16 %v405, %v389
    %v550 = vpack.c.b16 %v406, %v390
    %v551 = vpack.c.b16 %v407, %v391
    %v552 = vpack.c.b16 %v408, %v392
    %v553 = vpack.c.b16 %v409, %v393
    %v554 = vpack.c.b16 %v410, %v394
    %v555 = vpack.c.b16 %v411, %v395
    %v556 = vpack.c.b16 %v412, %v396
    %v557 = vpack.c.b16 %v429, %v413
    %v558 = vpack.c.b16 %v430, %v414
    %v559 = vpack.c.b16 %v431, %v415
    %v560 = vpack.c.b16 %v432, %v416
    %v561 = vpack.c.b16 %v433, %v417
    %v562 = vpack.c.b16 %v434, %v418
    %v563 = vpack.c.b16 %v435, %v419
    %v564 = vpack.c.b16 %v436, %v420
    %v565 = vpack.c.b16 %v437, %v421
    %v566 = vpack.c.b16 %v438, %v422
    %v567 = vpack.c.b16 %v439, %v423
    %v568 = vpack.c.b16 %v440, %v424
    %v569 = vpack.c.b16 %v441, %v425
    %v570 = vpack.c.b16 %v442, %v426
    %v571 = vpack.c.b16 %v443, %v427
    %v572 = vpack.c.b16 %v444, %v428
    %v573 = vpack.c.b16 %v461, %v445
    %v574 = vpack.c.b16 %v462, %v446
    %v575 = vpack.c.b16 %v463, %v447
    %v576 = vpack.c.b16 %v464, %v448
    %v577 = vpack.c.b16 %v465, %v449
    %v578 = vpack.c.b16 %v466, %v450
    %v579 = vpack.c.b16 %v467, %v451
    %v580 = vpack.c.b16 %v468, %v452
    %v581 = vpack.c.b16 %v469, %v453
    %v582 = vpack.c.b16 %v470, %v454
    %v583 = vpack.c.b16 %v471, %v455
    %v584 = vpack.c.b16 %v472, %v456
    %v585 = vpack.c.b16 %v473, %v457
    %v586 = vpack.c.b16 %v474, %v458
    %v587 = vpack.c.b16 %v475, %v459
    %v588 = vpack.c.b16 %v476, %v460
    %v589 = vpack.c.b16 %v477, %v477
    %v590 = vpack.c.b16 %v478, %v478
    %v591 = vpack.c.b16 %v479, %v479
    %v592 = vpack.c.b16 %v480, %v480
    %v593 = vpack.c.b16 %v481, %v481
    %v594 = vpack.c.b16 %v482, %v482
    %v595 = vpack.c.b16 %v483, %v483
    %v596 = vpack.c.b16 %v484, %v484
    %v597 = vpack.c.b16 %v485, %v485
    %v598 = vpack.c.b16 %v486, %v486
    %v599 = vpack.c.b16 %v487, %v487
    %v600 = vpack.c.b16 %v488, %v488
    %v601 = vpack.c.b16 %v489, %v489
    %v602 = vpack.c.b16 %v490, %v490
    %v603 = vpack.c.b16 %v491, %v491
    %v604 = vpack.c.b16 %v492, %v492
    %vm701 = vcmask 818176
    %v703 = vsel %vm701, %v76, 0
    %vm705 = vcmask 1041408
    %v707 = vsel %vm705, %v589, 0
    %v710 = vsel %vm705, %v590, 0
    %v713 = vsel %vm705, %v591, 0
    %v716 = vsel %vm705, %v592, 0
    %v719 = vsel %vm705, %v593, 0
    %v722 = vsel %vm705, %v594, 0
    %v725 = vsel %vm705, %v595, 0
    %v728 = vsel %vm705, %v596, 0
    %v731 = vsel %vm705, %v597, 0
    %v734 = vsel %vm705, %v598, 0
    %v737 = vsel %vm705, %v599, 0
    %v740 = vsel %vm705, %v600, 0
    %v743 = vsel %vm705, %v601, 0
    %v746 = vsel %vm705, %v602, 0
    %v749 = vsel %vm705, %v603, 0
    %v752 = vsel %vm705, %v604, 0
    %754 = vmatpush.bf16.msra.mxu0 0
    %755 = vmatpush.bf16.msra.mxu0 %v707
    %756 = vmatpush.bf16.msra.mxu0 %v573
    %757 = vmatpush.bf16.msra.mxu0 %v557
    %758 = vmatpush.bf16.msra.mxu0 %v541
    %759 = vmatpush.bf16.msra.mxu0 %v525
    %760 = vmatpush.bf16.msra.mxu0 %v509
    %761 = vmatpush.bf16.msra.mxu0 %v493
    %762 = vmatmul.bf16.gmra.mxu0 %v703
    %v763 = vpop.f32.mrf.mxu0
    %v764 = vadd.f32 0.0, %v763
    %v765 = vpop.f32.mrf.mxu0
    %766 = vdwg.mxu0
    %767 = vmatpush.bf16.msra.mxu0 0
    %768 = vmatpush.bf16.msra.mxu0 %v710
    %769 = vmatpush.bf16.msra.mxu0 %v574
    %770 = vmatpush.bf16.msra.mxu0 %v558
    %771 = vmatpush.bf16.msra.mxu0 %v542
    %772 = vmatpush.bf16.msra.mxu0 %v526
    %773 = vmatpush.bf16.msra.mxu0 %v510
    %774 = vmatpush.bf16.msra.mxu0 %v494
    %775 = vmatmul.bf16.gmra.mxu0 %v703
    %v776 = vpop.f32.mrf.mxu0
    %v777 = vadd.f32 0.0, %v776
    %v778 = vpop.f32.mrf.mxu0
    %779 = vdwg.mxu0
    %780 = vmatpush.bf16.msra.mxu0 0
    %781 = vmatpush.bf16.msra.mxu0 %v713
    %782 = vmatpush.bf16.msra.mxu0 %v575
    %783 = vmatpush.bf16.msra.mxu0 %v559
    %784 = vmatpush.bf16.msra.mxu0 %v543
    %785 = vmatpush.bf16.msra.mxu0 %v527
    %786 = vmatpush.bf16.msra.mxu0 %v511
    %787 = vmatpush.bf16.msra.mxu0 %v495
    %788 = vmatmul.bf16.gmra.mxu0 %v703
    %v789 = vpop.f32.mrf.mxu0
    %v790 = vadd.f32 0.0, %v789
    %v791 = vpop.f32.mrf.mxu0
    %792 = vdwg.mxu0
    %793 = vmatpush.bf16.msra.mxu0 0
    %794 = vmatpush.bf16.msra.mxu0 %v716
    %795 = vmatpush.bf16.msra.mxu0 %v576
    %796 = vmatpush.bf16.msra.mxu0 %v560
    %797 = vmatpush.bf16.msra.mxu0 %v544
    %798 = vmatpush.bf16.msra.mxu0 %v528
    %799 = vmatpush.bf16.msra.mxu0 %v512
    %800 = vmatpush.bf16.msra.mxu0 %v496
    %801 = vmatmul.bf16.gmra.mxu0 %v703
    %v802 = vpop.f32.mrf.mxu0
    %v803 = vadd.f32 0.0, %v802
    %v804 = vpop.f32.mrf.mxu0
    %805 = vdwg.mxu0
    %806 = vmatpush.bf16.msra.mxu0 0
    %807 = vmatpush.bf16.msra.mxu0 %v719
    %808 = vmatpush.bf16.msra.mxu0 %v577
    %809 = vmatpush.bf16.msra.mxu0 %v561
    %810 = vmatpush.bf16.msra.mxu0 %v545
    %811 = vmatpush.bf16.msra.mxu0 %v529
    %812 = vmatpush.bf16.msra.mxu0 %v513
    %813 = vmatpush.bf16.msra.mxu0 %v497
    %814 = vmatmul.bf16.gmra.mxu0 %v703
    %v815 = vpop.f32.mrf.mxu0
    %v816 = vadd.f32 0.0, %v815
    %v817 = vpop.f32.mrf.mxu0
    %818 = vdwg.mxu0
    %819 = vmatpush.bf16.msra.mxu0 0
    %820 = vmatpush.bf16.msra.mxu0 %v722
    %821 = vmatpush.bf16.msra.mxu0 %v578
    %822 = vmatpush.bf16.msra.mxu0 %v562
    %823 = vmatpush.bf16.msra.mxu0 %v546
    %824 = vmatpush.bf16.msra.mxu0 %v530
    %825 = vmatpush.bf16.msra.mxu0 %v514
    %826 = vmatpush.bf16.msra.mxu0 %v498
    %827 = vmatmul.bf16.gmra.mxu0 %v703
    %v828 = vpop.f32.mrf.mxu0
    %v829 = vadd.f32 0.0, %v828
    %v830 = vpop.f32.mrf.mxu0
    %831 = vdwg.mxu0
    %832 = vmatpush.bf16.msra.mxu0 0
    %833 = vmatpush.bf16.msra.mxu0 %v725
    %834 = vmatpush.bf16.msra.mxu0 %v579
    %835 = vmatpush.bf16.msra.mxu0 %v563
    %836 = vmatpush.bf16.msra.mxu0 %v547
    %837 = vmatpush.bf16.msra.mxu0 %v531
    %838 = vmatpush.bf16.msra.mxu0 %v515
    %839 = vmatpush.bf16.msra.mxu0 %v499
    %840 = vmatmul.bf16.gmra.mxu0 %v703
    %v841 = vpop.f32.mrf.mxu0
    %v842 = vadd.f32 0.0, %v841
    %v843 = vpop.f32.mrf.mxu0
    %844 = vdwg.mxu0
    %845 = vmatpush.bf16.msra.mxu0 0
    %846 = vmatpush.bf16.msra.mxu0 %v728
    %847 = vmatpush.bf16.msra.mxu0 %v580
    %848 = vmatpush.bf16.msra.mxu0 %v564
    %849 = vmatpush.bf16.msra.mxu0 %v548
    %850 = vmatpush.bf16.msra.mxu0 %v532
    %851 = vmatpush.bf16.msra.mxu0 %v516
    %852 = vmatpush.bf16.msra.mxu0 %v500
    %853 = vmatmul.bf16.gmra.mxu0 %v703
    %v854 = vpop.f32.mrf.mxu0
    %v855 = vadd.f32 0.0, %v854
    %v856 = vpop.f32.mrf.mxu0
    %857 = vdwg.mxu0
    %858 = vmatpush.bf16.msra.mxu0 0
    %859 = vmatpush.bf16.msra.mxu0 %v731
    %860 = vmatpush.bf16.msra.mxu0 %v581
    %861 = vmatpush.bf16.msra.mxu0 %v565
    %862 = vmatpush.bf16.msra.mxu0 %v549
    %863 = vmatpush.bf16.msra.mxu0 %v533
    %864 = vmatpush.bf16.msra.mxu0 %v517
    %865 = vmatpush.bf16.msra.mxu0 %v501
    %866 = vmatmul.bf16.gmra.mxu0 %v703
    %v867 = vpop.f32.mrf.mxu0
    %v868 = vadd.f32 0.0, %v867
    %v869 = vpop.f32.mrf.mxu0
    %870 = vdwg.mxu0
    %871 = vmatpush.bf16.msra.mxu0 0
    %872 = vmatpush.bf16.msra.mxu0 %v734
    %873 = vmatpush.bf16.msra.mxu0 %v582
    %874 = vmatpush.bf16.msra.mxu0 %v566
    %875 = vmatpush.bf16.msra.mxu0 %v550
    %876 = vmatpush.bf16.msra.mxu0 %v534
    %877 = vmatpush.bf16.msra.mxu0 %v518
    %878 = vmatpush.bf16.msra.mxu0 %v502
    %879 = vmatmul.bf16.gmra.mxu0 %v703
    %v880 = vpop.f32.mrf.mxu0
    %v881 = vadd.f32 0.0, %v880
    %v882 = vpop.f32.mrf.mxu0
    %883 = vdwg.mxu0
    %884 = vmatpush.bf16.msra.mxu0 0
    %885 = vmatpush.bf16.msra.mxu0 %v737
    %886 = vmatpush.bf16.msra.mxu0 %v583
    %887 = vmatpush.bf16.msra.mxu0 %v567
    %888 = vmatpush.bf16.msra.mxu0 %v551
    %889 = vmatpush.bf16.msra.mxu0 %v535
    %890 = vmatpush.bf16.msra.mxu0 %v519
    %891 = vmatpush.bf16.msra.mxu0 %v503
    %892 = vmatmul.bf16.gmra.mxu0 %v703
    %v893 = vpop.f32.mrf.mxu0
    %v894 = vadd.f32 0.0, %v893
    %v895 = vpop.f32.mrf.mxu0
    %896 = vdwg.mxu0
    %897 = vmatpush.bf16.msra.mxu0 0
    %898 = vmatpush.bf16.msra.mxu0 %v740
    %899 = vmatpush.bf16.msra.mxu0 %v584
    %900 = vmatpush.bf16.msra.mxu0 %v568
    %901 = vmatpush.bf16.msra.mxu0 %v552
    %902 = vmatpush.bf16.msra.mxu0 %v536
    %903 = vmatpush.bf16.msra.mxu0 %v520
    %904 = vmatpush.bf16.msra.mxu0 %v504
    %905 = vmatmul.bf16.gmra.mxu0 %v703
    %v906 = vpop.f32.mrf.mxu0
    %v907 = vadd.f32 0.0, %v906
    %v908 = vpop.f32.mrf.mxu0
    %909 = vdwg.mxu0
    %910 = vmatpush.bf16.msra.mxu0 0
    %911 = vmatpush.bf16.msra.mxu0 %v743
    %912 = vmatpush.bf16.msra.mxu0 %v585
    %913 = vmatpush.bf16.msra.mxu0 %v569
    %914 = vmatpush.bf16.msra.mxu0 %v553
    %915 = vmatpush.bf16.msra.mxu0 %v537
    %916 = vmatpush.bf16.msra.mxu0 %v521
    %917 = vmatpush.bf16.msra.mxu0 %v505
    %918 = vmatmul.bf16.gmra.mxu0 %v703
    %v919 = vpop.f32.mrf.mxu0
    %v920 = vadd.f32 0.0, %v919
    %v921 = vpop.f32.mrf.mxu0
    %922 = vdwg.mxu0
    %923 = vmatpush.bf16.msra.mxu0 0
    %924 = vmatpush.bf16.msra.mxu0 %v746
    %925 = vmatpush.bf16.msra.mxu0 %v586
    %926 = vmatpush.bf16.msra.mxu0 %v570
    %927 = vmatpush.bf16.msra.mxu0 %v554
    %928 = vmatpush.bf16.msra.mxu0 %v538
    %929 = vmatpush.bf16.msra.mxu0 %v522
    %930 = vmatpush.bf16.msra.mxu0 %v506
    %931 = vmatmul.bf16.gmra.mxu0 %v703
    %v932 = vpop.f32.mrf.mxu0
    %v933 = vadd.f32 0.0, %v932
    %v934 = vpop.f32.mrf.mxu0
    %935 = vdwg.mxu0
    %936 = vmatpush.bf16.msra.mxu0 0
    %937 = vmatpush.bf16.msra.mxu0 %v749
    %938 = vmatpush.bf16.msra.mxu0 %v587
    %939 = vmatpush.bf16.msra.mxu0 %v571
    %940 = vmatpush.bf16.msra.mxu0 %v555
    %941 = vmatpush.bf16.msra.mxu0 %v539
    %942 = vmatpush.bf16.msra.mxu0 %v523
    %943 = vmatpush.bf16.msra.mxu0 %v507
    %944 = vmatmul.bf16.gmra.mxu0 %v703
    %v945 = vpop.f32.mrf.mxu0
    %v946 = vadd.f32 0.0, %v945
    %v947 = vpop.f32.mrf.mxu0
    %948 = vdwg.mxu0
    %949 = vmatpush.bf16.msra.mxu0 0
    %950 = vmatpush.bf16.msra.mxu0 %v752
    %951 = vmatpush.bf16.msra.mxu0 %v588
    %952 = vmatpush.bf16.msra.mxu0 %v572
    %953 = vmatpush.bf16.msra.mxu0 %v556
    %954 = vmatpush.bf16.msra.mxu0 %v540
    %955 = vmatpush.bf16.msra.mxu0 %v524
    %956 = vmatpush.bf16.msra.mxu0 %v508
    %957 = vmatmul.bf16.gmra.mxu0 %v703
    %v958 = vpop.f32.mrf.mxu0
    %v959 = vadd.f32 0.0, %v958
    %v960 = vpop.f32.mrf.mxu0
    %961 = vdwg.mxu0
    %v962 = vld [vmem:[#allocation7] sm:$0xff]
    %v963 = vld [vmem:[#allocation7 + $0x8] sm:$0xff]
    %v966 = vperm.slane %v962, 0
    %v967 = vperm.slane %v962, 1
    %v968 = vperm.slane %v962, 2
    %v969 = vperm.slane %v962, 3
    %v970 = vperm.slane %v962, 4
    %v971 = vperm.slane %v962, 5
    %v972 = vperm.slane %v962, 6
    %v973 = vperm.slane %v962, 7
    %v974 = vperm.slane %v963, 0
    %v975 = vperm.slane %v963, 1
    %v976 = vperm.slane %v963, 2
    %v977 = vperm.slane %v963, 3
    %v978 = vperm.slane %v963, 4
    %v979 = vperm.slane %v963, 5
    %v980 = vperm.slane %v963, 6
    %v981 = vperm.slane %v963, 7
    %v998 = vmul.f32 %v764, %v966
    %v999 = vmul.f32 %v777, %v967
    %v1000 = vmul.f32 %v790, %v968
    %v1001 = vmul.f32 %v803, %v969
    %v1002 = vmul.f32 %v816, %v970
    %v1003 = vmul.f32 %v829, %v971
    %v1004 = vmul.f32 %v842, %v972
    %v1005 = vmul.f32 %v855, %v973
    %v1006 = vmul.f32 %v868, %v974
    %v1007 = vmul.f32 %v881, %v975
    %v1008 = vmul.f32 %v894, %v976
    %v1009 = vmul.f32 %v907, %v977
    %v1010 = vmul.f32 %v920, %v978
    %v1011 = vmul.f32 %v933, %v979
    %v1012 = vmul.f32 %v946, %v980
    %v1013 = vmul.f32 %v959, %v981
    %v1014 = vld [vmem:[#allocation8] sm:$0xff]
    %v1015 = vld [vmem:[#allocation8 + $0x8] sm:$0xff]
    %v1018 = vperm.slane %v1014, 0
    %v1019 = vperm.slane %v1014, 1
    %v1020 = vperm.slane %v1014, 2
    %v1021 = vperm.slane %v1014, 3
    %v1022 = vperm.slane %v1014, 4
    %v1023 = vperm.slane %v1014, 5
    %v1024 = vperm.slane %v1014, 6
    %v1025 = vperm.slane %v1014, 7
    %v1026 = vperm.slane %v1015, 0
    %v1027 = vperm.slane %v1015, 1
    %v1028 = vperm.slane %v1015, 2
    %v1029 = vperm.slane %v1015, 3
    %v1030 = vperm.slane %v1015, 4
    %v1031 = vperm.slane %v1015, 5
    %v1032 = vperm.slane %v1015, 6
    %v1033 = vperm.slane %v1015, 7
    %v1050 = vadd.f32 %v998, %v1018
    %v1051 = vadd.f32 %v999, %v1019
    %v1052 = vadd.f32 %v1000, %v1020
    %v1053 = vadd.f32 %v1001, %v1021
    %v1054 = vadd.f32 %v1002, %v1022
    %v1055 = vadd.f32 %v1003, %v1023
    %v1056 = vadd.f32 %v1004, %v1024
    %v1057 = vadd.f32 %v1005, %v1025
    %v1058 = vadd.f32 %v1006, %v1026
    %v1059 = vadd.f32 %v1007, %v1027
    %v1060 = vadd.f32 %v1008, %v1028
    %v1061 = vadd.f32 %v1009, %v1029
    %v1062 = vadd.f32 %v1010, %v1030
    %v1063 = vadd.f32 %v1011, %v1031
    %v1064 = vadd.f32 %v1012, %v1032
    %v1065 = vadd.f32 %v1013, %v1033
    %v1066 = vmax.f32 %v1050, 0.0
    %v1067 = vmax.f32 %v1051, 0.0
    %v1068 = vmax.f32 %v1052, 0.0
    %v1069 = vmax.f32 %v1053, 0.0
    %v1070 = vmax.f32 %v1054, 0.0
    %v1071 = vmax.f32 %v1055, 0.0
    %v1072 = vmax.f32 %v1056, 0.0
    %v1073 = vmax.f32 %v1057, 0.0
    %v1074 = vmax.f32 %v1058, 0.0
    %v1075 = vmax.f32 %v1059, 0.0
    %v1076 = vmax.f32 %v1060, 0.0
    %v1077 = vmax.f32 %v1061, 0.0
    %v1078 = vmax.f32 %v1062, 0.0
    %v1079 = vmax.f32 %v1063, 0.0
    %v1080 = vmax.f32 %v1064, 0.0
    %v1081 = vmax.f32 %v1065, 0.0
    %v1082 = vpack.c.bf16 %v1067, %v1066
    %v1083 = vpack.c.bf16 %v1069, %v1068
    %v1084 = vpack.c.bf16 %v1071, %v1070
    %v1085 = vpack.c.bf16 %v1073, %v1072
    %v1086 = vpack.c.bf16 %v1075, %v1074
    %v1087 = vpack.c.bf16 %v1077, %v1076
    %v1088 = vpack.c.bf16 %v1079, %v1078
    %v1089 = vpack.c.bf16 %v1081, %v1080
    %v1098 = vrot.slane %v1082, 3
    %v1099 = vrot.slane %v1083, 6
    %v1100 = vrot.slane %v1083, 1
    %v1101 = vrot.slane %v1084, 4
    %v1102 = vrot.slane %v1084, 7
    %v1103 = vrot.slane %v1085, 2
    %v1104 = vrot.slane %v1085, 5
    %v1105 = vrot.slane %v1086, 3
    %v1106 = vrot.slane %v1087, 6
    %v1107 = vrot.slane %v1087, 1
    %v1108 = vrot.slane %v1088, 4
    %v1109 = vrot.slane %v1088, 7
    %v1110 = vrot.slane %v1089, 2
    %v1111 = vrot.slane %v1089, 5
    %vm1112 = vcmask 1040384
    %v1115 = vsel %vm1112, %v1082, %v1098
    %vm1116 = vcmask 1042434
    %v1119 = vsel %vm1116, %v1099, %v1100
    %v1120 = vsel %vm705, %v1115, %v1119
    %vm1121 = vcmask 1044484
    %v1124 = vsel %vm1121, %v1101, %v1102
    %vm1125 = vcmask 1046534
    %v1128 = vsel %vm1125, %v1103, %v1104
    %vm1129 = vcmask 1045508
    %v1130 = vsel %vm1129, %v1124, %v1128
    %vm1131 = vcmask 1043456
    %v1132 = vsel %vm1131, %v1120, %v1130
    %v1135 = vsel %vm1112, %v1086, %v1105
    %v1138 = vsel %vm1116, %v1106, %v1107
    %v1139 = vsel %vm705, %v1135, %v1138
    %v1142 = vsel %vm1121, %v1108, %v1109
    %v1145 = vsel %vm1125, %v1110, %v1111
    %v1146 = vsel %vm1129, %v1142, %v1145
    %v1147 = vsel %vm1131, %v1139, %v1146
    %1150 = vst [vmem:[#allocation10] sm:$0xff] %v1132
    %1151 = vst [vmem:[#allocation10 + $0x8] sm:$0xff] %v1147
    // Predicated region
    $region34: #{tpu_custom_call.1} parent=1 // pred_check
      _
    $region35: #{tpu_custom_call.1} parent=1 // pred_check_branch
      %1153 = sbr.rel (0) target = $region37
    $region36: #{tpu_custom_call.1} parent=1 // pred_region
      %1155 = vsyncadd [#allocation4], 0
      %s1157 = sshll.u32 [#allocation10], 4
      %s1158 = int_to_ptr.vmem [resolvable:$true] %s1157
      %s1159 = sshll.u32 %s4, 4
      %s1160 = int_to_ptr.hbm [resolvable:$true] %s1159
      %1162 = dma.vmem_to_hbm [thread:$0]  %s1158, 256, %s1160, [#allocation4]
    $region37: #{tpu_custom_call.1} parent=1 // pred_fallthru
      _
    // Predicated region
    $region38: #{tpu_custom_call.1} parent=1 // pred_check
      _
    $region39: #{tpu_custom_call.1} parent=1 // pred_check_branch
      %1164 = sbr.rel (0) target = $region41
    $region40: #{tpu_custom_call.1} parent=1 // pred_region
      %1166 = dma.done [#allocation4], 256
    $region41: #{tpu_custom_call.1} parent=1 // pred_fallthru
      _
    %1167 = vsyncpa [#allocation3], 1
    %1168 = vsyncpa [#allocation6], 1
    %1169 = vsyncpa [#allocation9], 1
    %1170 = vsyncpa [#allocation4], 1

</llo_original>
